<compile_context>
chip_gen: v5e
topology: v5e:2x2
jax: 0.10.0
libtpu: 0.0.40
codegen_flags: <defaults>
</compile_context>

<pallas_src>
import math
from functools import partial

import jax
import jax.numpy as jnp
from jax.experimental import pallas as pl
from jax.experimental.pallas import tpu as pltpu

LANE = 128
SUBLANE = 8


def _round_up(x, m):
    return ((x + m - 1) // m) * m


def _elu(x):
    # PyTorch nn.ELU (alpha=1.0).  exp argument clamped to <= 0 so the untaken
    # branch of the select cannot overflow.  ELU(0) == 0, so zero-padded
    # columns stay exactly zero through the whole network.
    return jnp.where(x > 0.0, x, jnp.exp(jnp.minimum(x, 0.0)) - 1.0)


class MLP3Layout:
    """Static row/column layout of the packed parameter slab."""

    def __init__(self, input_size, hidden_sizes):
        self.input_size = int(input_size)
        self.hidden_sizes = [int(h) for h in hidden_sizes]
        L = len(self.hidden_sizes)
        # All widths (hidden dims) are padded to the 128-lane vreg width.
        self.W = _round_up(max(self.hidden_sizes), LANE)

        # Weight blocks: block 0 has exactly round_up(Din, 8) rows (x is not
        # padded); blocks i>0 have W rows because the running activation h is
        # kept zero-padded to width W.
        self.wblock_starts = []
        self.wblock_rows = []
        r = 0
        for i in range(L):
            rows = _round_up(self.input_size, SUBLANE) if i == 0 else self.W
            self.wblock_starts.append(r)
            self.wblock_rows.append(rows)
            r += rows

        # Vector block: row i = bias of hidden layer i, row L = out_w,
        # row L+1 col 0 = out_b.
        self.vec_start = r
        self.vec_rows = _round_up(L + 2, SUBLANE)
        self.total_rows = r + self.vec_rows


def pack_mlp3_params(params, layout):
    """One-time packing of all parameters into a single lane-dense f32 slab.

    Hoists every transpose / reshape / pad out of the per-call forward path.
    """
    W = layout.W
    slab = jnp.zeros((layout.total_rows, W), jnp.float32)
    prev = layout.input_size
    for i, (w, b) in enumerate(params["hidden"]):
        h = w.shape[0]
        r0 = layout.wblock_starts[i]
        slab = slab.at[r0:r0 + prev, :h].set(w.T.astype(jnp.float32))
        slab = slab.at[layout.vec_start + i, :h].set(b.astype(jnp.float32))
        prev = h
    L = len(layout.hidden_sizes)
    slab = slab.at[layout.vec_start + L, :prev].set(
        params["out_w"].reshape(-1).astype(jnp.float32))
    slab = slab.at[layout.vec_start + L + 1, 0].set(
        params["out_b"].reshape(()).astype(jnp.float32))
    return slab


def _make_mlp3_kernel(layout):
    Din = layout.input_size
    L = len(layout.hidden_sizes)
    vs = layout.vec_start

    def kernel(x_ref, slab_ref, out_ref):
        h = x_ref[...]                                     # (B, Din) f32
        prev_rows = Din
        for i in range(L):                                 # static unroll
            r0 = layout.wblock_starts[i]
            w = slab_ref[r0:r0 + prev_rows, :]             # (prev_rows, W)
            b = slab_ref[vs + i:vs + i + 1, :]             # (1, W)
            h = jnp.dot(h, w, preferred_element_type=jnp.float32) + b
            h = _elu(h)                                    # padded cols stay 0
            prev_rows = layout.W
            # TODO(synk): dropout omitted (nn.Dropout is a no-op at inference).

        w_out = slab_ref[vs + L:vs + L + 1, :]             # (1, W), zero-padded
        b_out_row = slab_ref[vs + L + 1:vs + L + 2, :]     # (1, W)
        b_out = b_out_row[:, 0:1]                          # (1, 1)
        # Final Linear(H_last, 1) on the VPU/XLU: broadcast multiply + lane reduce.
        out_ref[...] = jnp.sum(h * w_out, axis=-1, keepdims=True) + b_out

    return kernel


def mlp3_forward(x, slab, layout):
    """x: (B, input_size) f32, slab: packed params.  Returns (B,) (0-d if B==1),
    matching `self.output_layer(self.layers(x)).squeeze()` of the PyTorch module."""
    B = x.shape[0]
    hs = layout.hidden_sizes
    dims = [layout.input_size] + hs
    flops = 2 * B * (sum(a * b for a, b in zip(dims[:-1], dims[1:])) + hs[-1])
    transcendentals = B * sum(hs)
    bytes_accessed = 4 * (x.size + slab.size + B)

    vmem = lambda: pl.BlockSpec(memory_space=pltpu.MemorySpace.VMEM)
    out = pl.pallas_call(
        _make_mlp3_kernel(layout),
        out_shape=jax.ShapeDtypeStruct((B, 1), jnp.float32),
        in_specs=[vmem(), vmem()],
        out_specs=vmem(),
        cost_estimate=pl.CostEstimate(
            flops=flops,
            transcendentals=transcendentals,
            bytes_accessed=bytes_accessed,
        ),
    )(x, slab)
    return out.squeeze()


def mlp3_reference(x, params):
    """Pure-JAX reference of the same forward pass (for correctness checking)."""
    h = x
    for (w, b) in params["hidden"]:
        h = h @ w.T + b
        h = jnp.where(h > 0.0, h, jnp.exp(jnp.minimum(h, 0.0)) - 1.0)
    out = h @ params["out_w"].T + params["out_b"]
    return out.squeeze()


def init_params(key, input_size, hidden_sizes):
    """Mirror PyTorch nn.Linear default init: U(-1/sqrt(fan_in), +1/sqrt(fan_in))
    for both weights and biases."""
    keys = jax.random.split(key, 2 * (len(hidden_sizes) + 1))
    hidden = []
    prev = input_size
    ki = 0
    for h in hidden_sizes:
        bound = 1.0 / math.sqrt(prev)
        w = jax.random.uniform(keys[ki], (h, prev), jnp.float32, -bound, bound); ki += 1
        b = jax.random.uniform(keys[ki], (h,), jnp.float32, -bound, bound); ki += 1
        hidden.append((w, b))
        prev = h
    bound = 1.0 / math.sqrt(prev)
    out_w = jax.random.uniform(keys[ki], (1, prev), jnp.float32, -bound, bound); ki += 1
    out_b = jax.random.uniform(keys[ki], (1,), jnp.float32, -bound, bound)
    return {"hidden": hidden, "out_w": out_w, "out_b": out_b}


if __name__ == "__main__":
    # MLP3(input_size=16, hidden_size=[64, 32], dropout_rate=0.1, act_fn='ELU',
    #      norm_type=None, lastlayer_reg=True) — dropout is a no-op at inference.
    B, Din = 2, 16
    hidden_sizes = [64, 32]

    key = jax.random.PRNGKey(0)
    k_x, k_p = jax.random.split(key)
    x = jax.random.normal(k_x, (B, Din), dtype=jnp.float32)
    params = init_params(k_p, Din, hidden_sizes)

    # One-time packing (hoisted out of the per-call forward path).
    layout = MLP3Layout(Din, hidden_sizes)
    slab = jax.block_until_ready(pack_mlp3_params(params, layout))

    forward = jax.jit(partial(mlp3_forward, layout=layout))
    y = jax.block_until_ready(forward(x, slab))
    assert y.shape == (B,), y.shape

    y_ref = mlp3_reference(x, params)
    assert float(jnp.max(jnp.abs(y - y_ref))) < 1e-4, (y, y_ref)

    print("KERNEL_OK")
</pallas_src>

<mosaic_0001>
module attributes {stable_mosaic.version = 11 : i64} {
  func.func @kernel(%arg0: memref<2x16xf32, #tpu.memory_space<vmem>>, %arg1: memref<152x128xf32, #tpu.memory_space<vmem>>, %arg2: memref<2x1xf32, #tpu.memory_space<vmem>>) attributes {dimension_semantics = [], scalar_prefetch = 0 : i64, scratch_operands = 0 : i64, tpu.core_type = #tpu.core_type<tc>} {
    %c0 = arith.constant 0 : index
    %c0_0 = arith.constant 0 : index
    %0 = vector.load %arg0[%c0, %c0_0] : memref<2x16xf32, #tpu.memory_space<vmem>>, vector<2x16xf32>
    %c0_1 = arith.constant 0 : index
    %c0_2 = arith.constant 0 : index
    %1 = vector.load %arg1[%c0_1, %c0_2] : memref<152x128xf32, #tpu.memory_space<vmem>>, vector<16x128xf32>
    %c144 = arith.constant 144 : index
    %c0_3 = arith.constant 0 : index
    %2 = vector.load %arg1[%c144, %c0_3] : memref<152x128xf32, #tpu.memory_space<vmem>>, vector<1x128xf32>
    %cst = arith.constant dense<0.000000e+00> : vector<2x128xf32>
    %3 = tpu.matmul %0, %1, %cst {dimension_numbers = #tpu.dot_dimension_numbers<[1], [0], [0], [1], [0, 0, 1, 1], [], []>} : vector<2x16xf32>, vector<16x128xf32>, vector<2x128xf32> -> vector<2x128xf32>
    %4 = vector.broadcast %2 : vector<1x128xf32> to vector<2x128xf32>
    %5 = arith.addf %3, %4 : vector<2x128xf32>
    %cst_4 = arith.constant 0.000000e+00 : f32
    %6 = vector.broadcast %cst_4 : f32 to vector<2x128xf32>
    %7 = arith.cmpf ogt, %5, %6 : vector<2x128xf32>
    %cst_5 = arith.constant 0.000000e+00 : f32
    %8 = vector.broadcast %cst_5 : f32 to vector<2x128xf32>
    %9 = arith.minimumf %5, %8 : vector<2x128xf32>
    %10 = math.exp %9 : vector<2x128xf32>
    %cst_6 = arith.constant 1.000000e+00 : f32
    %11 = vector.broadcast %cst_6 : f32 to vector<2x128xf32>
    %12 = arith.subf %10, %11 : vector<2x128xf32>
    %13 = arith.select %7, %5, %12 : vector<2x128xi1>, vector<2x128xf32>
    %c16 = arith.constant 16 : index
    %c0_7 = arith.constant 0 : index
    %14 = vector.load %arg1[%c16, %c0_7] : memref<152x128xf32, #tpu.memory_space<vmem>>, vector<128x128xf32>
    %c145 = arith.constant 145 : index
    %c0_8 = arith.constant 0 : index
    %15 = vector.load %arg1[%c145, %c0_8] : memref<152x128xf32, #tpu.memory_space<vmem>>, vector<1x128xf32>
    %cst_9 = arith.constant dense<0.000000e+00> : vector<2x128xf32>
    %16 = tpu.matmul %13, %14, %cst_9 {dimension_numbers = #tpu.dot_dimension_numbers<[1], [0], [0], [1], [0, 0, 1, 1], [], []>} : vector<2x128xf32>, vector<128x128xf32>, vector<2x128xf32> -> vector<2x128xf32>
    %17 = vector.broadcast %15 : vector<1x128xf32> to vector<2x128xf32>
    %18 = arith.addf %16, %17 : vector<2x128xf32>
    %cst_10 = arith.constant 0.000000e+00 : f32
    %19 = vector.broadcast %cst_10 : f32 to vector<2x128xf32>
    %20 = arith.cmpf ogt, %18, %19 : vector<2x128xf32>
    %cst_11 = arith.constant 0.000000e+00 : f32
    %21 = vector.broadcast %cst_11 : f32 to vector<2x128xf32>
    %22 = arith.minimumf %18, %21 : vector<2x128xf32>
    %23 = math.exp %22 : vector<2x128xf32>
    %cst_12 = arith.constant 1.000000e+00 : f32
    %24 = vector.broadcast %cst_12 : f32 to vector<2x128xf32>
    %25 = arith.subf %23, %24 : vector<2x128xf32>
    %26 = arith.select %20, %18, %25 : vector<2x128xi1>, vector<2x128xf32>
    %c146 = arith.constant 146 : index
    %c0_13 = arith.constant 0 : index
    %27 = vector.load %arg1[%c146, %c0_13] : memref<152x128xf32, #tpu.memory_space<vmem>>, vector<1x128xf32>
    %c147 = arith.constant 147 : index
    %c0_14 = arith.constant 0 : index
    %28 = vector.load %arg1[%c147, %c0_14] : memref<152x128xf32, #tpu.memory_space<vmem>>, vector<1x128xf32>
    %29 = vector.extract_strided_slice %28 {offsets = [0, 0], sizes = [1, 1], strides = [1, 1]} : vector<1x128xf32> to vector<1x1xf32>
    %30 = vector.broadcast %27 : vector<1x128xf32> to vector<2x128xf32>
    %31 = arith.mulf %26, %30 : vector<2x128xf32>
    %cst_15 = arith.constant dense<0.000000e+00> : vector<2xf32>
    %32 = vector.multi_reduction <add>, %31, %cst_15 [1] : vector<2x128xf32> to vector<2xf32>
    %33 = vector.shape_cast %32 : vector<2xf32> to vector<2x1xf32>
    %34 = vector.broadcast %29 : vector<1x1xf32> to vector<2x1xf32>
    %35 = arith.addf %33, %34 : vector<2x1xf32>
    %c0_16 = arith.constant 0 : index
    %c0_17 = arith.constant 0 : index
    %36 = vector.load %arg2[%c0_16, %c0_17] : memref<2x1xf32, #tpu.memory_space<vmem>>, vector<2x1xf32>
    tpu.vector_store %arg2[%c0_16, %c0_17], %35 {strides = array<i32>} : memref<2x1xf32, #tpu.memory_space<vmem>>, vector<2x1xf32>,
    return
  }
}

</mosaic_0001>

<llo_original>
// kernel: mlp3_forward.1
$region0: #{mlp3_forward.1}
  #allocation0 [shape = 'u32[]', space=smem, size = 0x4, offset = 0x4, fixed_abs, tag = 'smem constant byte address 0x4 - core index']
  #allocation1 [shape = 'u32[72,128]{1,0:T(1,128)}', space=vmem, size = 0x9000, scoped, tag = 'internal scratch']
  %s0 = inlined_call_operand.hbm [shape: f32[2,16], index: 0, kind: input, shape index: {}]
  %s1 = inlined_call_operand.hbm [shape: f32[152,128], index: 1, kind: input, shape index: {}]
  %s2 = inlined_call_operand.vmem [shape: f32[2,1], index: 2, kind: output, shape index: {}]
  %s3 = sld [smem:[#allocation0]]
  $region26: #{mlp3_forward.1} parent=0
    _
  %s5 = ssub.s32 1, %s3
  %s6 = scalar_select 0, %s5, %s3
  $region1: #{mlp3_forward.1} parent=0
    #allocation2 [shape = 'u8[1024]{0}', space=vmem, size = 0x400, scoped, tag = 'input window, operand 0, single buffered']
    #allocation3 [shape = 's32[1]{0}', space=sflag, size = 0x4, scoped, tag = 'scoped memory for mlp3_forward.1']
    #allocation4 [shape = 'u8[77824]{0}', space=vmem, size = 0x13000, scoped, tag = 'input window, operand 1, single buffered']
    #allocation5 [shape = 's32[1]{0}', space=sflag, size = 0x4, scoped, tag = 'scoped memory for mlp3_forward.1']
    %7 = vsyncpa [#allocation3], 0
    %8 = vsyncpa [#allocation5], 0
    // Predicated region
    $region2: #{mlp3_forward.1} parent=1 // pred_check
      _
    $region3: #{mlp3_forward.1} parent=1 // pred_check_branch
      %10 = sbr.rel (0) target = $region5
    $region4: #{mlp3_forward.1} parent=1 // pred_region
      %12 = vsyncadd [#allocation3], 0
      %s14 = sshll.u32 %s0, 4
      %s15 = int_to_ptr.hbm [resolvable:$true] %s14
      %s16 = sshll.u32 [#allocation2], 4
      %s17 = int_to_ptr.vmem [resolvable:$true] %s16
      %19 = dma.hbm_to_vmem [thread:$0]  %s15, 32, %s17, [#allocation3]
    $region5: #{mlp3_forward.1} parent=1 // pred_fallthru
      _
    // Predicated region
    $region6: #{mlp3_forward.1} parent=1 // pred_check
      _
    $region7: #{mlp3_forward.1} parent=1 // pred_check_branch
      %21 = sbr.rel (0) target = $region9
    $region8: #{mlp3_forward.1} parent=1 // pred_region
      %23 = vsyncadd [#allocation5], 0
      %s24 = sshll.u32 %s1, 4
      %s25 = int_to_ptr.hbm [resolvable:$true] %s24
      %s26 = sshll.u32 [#allocation4], 4
      %s27 = int_to_ptr.vmem [resolvable:$true] %s26
      %32 = dma.hbm_to_vmem [thread:$0]  %s25, 2432, %s27, [#allocation5], 128, 128, 8
    $region9: #{mlp3_forward.1} parent=1 // pred_fallthru
      _
    // Predicated region
    $region10: #{mlp3_forward.1} parent=1 // pred_check
      _
    $region11: #{mlp3_forward.1} parent=1 // pred_check_branch
      %34 = sbr.rel (0) target = $region13
    $region12: #{mlp3_forward.1} parent=1 // pred_region
      %36 = dma.done [#allocation3], 32
    $region13: #{mlp3_forward.1} parent=1 // pred_fallthru
      _
    // Predicated region
    $region14: #{mlp3_forward.1} parent=1 // pred_check
      _
    $region15: #{mlp3_forward.1} parent=1 // pred_check_branch
      %38 = sbr.rel (0) target = $region17
    $region16: #{mlp3_forward.1} parent=1 // pred_region
      %40 = dma.done [#allocation5], 2432
    $region17: #{mlp3_forward.1} parent=1 // pred_fallthru
      _
    %v41 = vld [vmem:[#allocation2] sm:$0x3]
    %v42 = vld [vmem:[#allocation4] sm:$0xff]
    %v43 = vld [vmem:[#allocation4 + $0x8] sm:$0xff]
    %v44 = vld [vmem:[#allocation4 + $0x90] sm:$0x1]
    %v45 = vperm.slane %v44, 0
    %vm46 = vcmask 130048
    %v48 = vsel %vm46, %v41, 0
    %50 = vmatpush.msra.mxu0 0.0
    %51 = vmatpush.msra.mxu0 0.0
    %52 = vmatpush.msra.mxu0 0.0
    %53 = vmatpush.msra.mxu0 0.0
    %54 = vmatpush.msra.mxu0 0.0
    %55 = vmatpush.msra.mxu0 0.0
    %56 = vmatpush.msra.mxu0 0.0
    %57 = vmatpush.msra.mxu0 0.0
    %58 = vmatpush.msra.mxu0 0.0
    %59 = vmatpush.msra.mxu0 0.0
    %60 = vmatpush.msra.mxu0 0.0
    %61 = vmatpush.msra.mxu0 0.0
    %62 = vmatpush.msra.mxu0 0.0
    %63 = vmatpush.msra.mxu0 0.0
    %64 = vmatpush.msra.mxu0 %v43
    %65 = vmatpush.msra.mxu0 %v42
    %66 = vmatmul.f32.gmra.mxu0 %v48
    %v67 = vpop.f32.mrf.mxu0
    %v68 = vadd.f32 %v45, %v67
    %69 = vdwg.mxu0
    %vm70 = vcmp.gt.f32.partialorder %v68, 0.0
    %v71 = vmin.f32 %v68, 0.0
    %v72 = vmul.f32 %v71, 1.442695
    %v73 = vpow.pop %v72
    %v74 = vsub.f32 %v73, 1.0
    %v75 = vsel %vm70, %v68, %v74
    %v76 = vld [vmem:[#allocation4 + $0x10] sm:$0xff]
    %v77 = vld [vmem:[#allocation4 + $0x18] sm:$0xff]
    %v78 = vld [vmem:[#allocation4 + $0x20] sm:$0xff]
    %v79 = vld [vmem:[#allocation4 + $0x28] sm:$0xff]
    %v80 = vld [vmem:[#allocation4 + $0x30] sm:$0xff]
    %v81 = vld [vmem:[#allocation4 + $0x38] sm:$0xff]
    %v82 = vld [vmem:[#allocation4 + $0x40] sm:$0xff]
    %v83 = vld [vmem:[#allocation4 + $0x48] sm:$0xff]
    %v84 = vld [vmem:[#allocation4 + $0x50] sm:$0xff]
    %v85 = vld [vmem:[#allocation4 + $0x58] sm:$0xff]
    %v86 = vld [vmem:[#allocation4 + $0x60] sm:$0xff]
    %v87 = vld [vmem:[#allocation4 + $0x68] sm:$0xff]
    %v88 = vld [vmem:[#allocation4 + $0x70] sm:$0xff]
    %v89 = vld [vmem:[#allocation4 + $0x78] sm:$0xff]
    %v90 = vld [vmem:[#allocation4 + $0x80] sm:$0xff]
    %v91 = vld [vmem:[#allocation4 + $0x88] sm:$0xff]
    %v92 = vld [vmem:[#allocation4 + $0x91] sm:$0x1]
    %v93 = vperm.slane %v92, 0
    %94 = vmatpush.msra.mxu0 %v91
    %95 = vmatpush.msra.mxu0 %v90
    %96 = vmatpush.msra.mxu0 %v89
    %97 = vmatpush.msra.mxu0 %v88
    %98 = vmatpush.msra.mxu0 %v87
    %99 = vmatpush.msra.mxu0 %v86
    %100 = vmatpush.msra.mxu0 %v85
    %101 = vmatpush.msra.mxu0 %v84
    %102 = vmatpush.msra.mxu0 %v83
    %103 = vmatpush.msra.mxu0 %v82
    %104 = vmatpush.msra.mxu0 %v81
    %105 = vmatpush.msra.mxu0 %v80
    %106 = vmatpush.msra.mxu0 %v79
    %107 = vmatpush.msra.mxu0 %v78
    %108 = vmatpush.msra.mxu0 %v77
    %109 = vmatpush.msra.mxu0 %v76
    %110 = vmatmul.f32.gmra.mxu0 %v75
    %v111 = vpop.f32.mrf.mxu0
    %v112 = vadd.f32 %v93, %v111
    %113 = vdwg.mxu0
    %vm114 = vcmp.gt.f32.partialorder %v112, 0.0
    %v115 = vmin.f32 %v112, 0.0
    %v116 = vmul.f32 %v115, 1.442695
    %v117 = vpow.pop %v116
    %v118 = vsub.f32 %v117, 1.0
    %v119 = vsel %vm114, %v112, %v118
    %v120 = vld [vmem:[#allocation4 + $0x92] sm:$0x1]
    %v121 = vld [vmem:[#allocation4 + $0x93] sm:$0x1]
    %v122 = vperm.slane %v120, 0
    %v123 = vmul.f32 %v119, %v122
    %vm124 = vcmask 1041408
    %v125 = vsel %vm124, %v123, 0.0
    %126 = vadd.xlane.f32.xlu0 %v125
    %v127 = vpop.xlane.xlu0 %126
    %v128 = vperm.slane %v121, 0
    %v129 = vadd.f32 %v127, %v128
    %vm130 = vcmask 1024
    %131 = vst.msk [vmem:[%s2] sm:$0x3] %vm130, %v129
    // Predicated region
    $region18: #{mlp3_forward.1} parent=1 // pred_check
      _
    $region19: #{mlp3_forward.1} parent=1 // pred_check_branch
      %133 = sbr.rel (0) target = $region21
    $region20: #{mlp3_forward.1} parent=1 // pred_region
      _
    $region21: #{mlp3_forward.1} parent=1 // pred_fallthru
      _
    // Predicated region
    $region22: #{mlp3_forward.1} parent=1 // pred_check
      _
    $region23: #{mlp3_forward.1} parent=1 // pred_check_branch
      %135 = sbr.rel (0) target = $region25
    $region24: #{mlp3_forward.1} parent=1 // pred_region
      _
    $region25: #{mlp3_forward.1} parent=1 // pred_fallthru
      _
    %136 = vsyncpa [#allocation3], 1
    %137 = vsyncpa [#allocation5], 1

</llo_original>
